<compile_context>
chip_gen: v7x
topology: tpu7x:2x2x1
jax: 0.10.0
libtpu: 0.0.40
codegen_flags: <defaults>
</compile_context>

<pallas_src>
import functools

import jax
import jax.numpy as jnp
from jax.experimental import pallas as pl
from jax.experimental.pallas import tpu as pltpu


# ---------------------------------------------------------------------------
# Exact GELU (PyTorch nn.GELU default) via a high-accuracy rational erf.
# ---------------------------------------------------------------------------
_ERF_P = 0.3275911
_ERF_A1 = 0.254829592
_ERF_A2 = -0.284496736
_ERF_A3 = 1.421413741
_ERF_A4 = -1.453152027
_ERF_A5 = 1.061405429


def _erf_approx(x):
    # Abramowitz & Stegun 7.1.26, |abs error| <= 1.5e-7 (f32-exact in practice).
    ax = jnp.abs(x)
    t = 1.0 / (1.0 + _ERF_P * ax)
    poly = t * (_ERF_A1 + t * (_ERF_A2 + t * (_ERF_A3 + t * (_ERF_A4 + t * _ERF_A5))))
    y = 1.0 - poly * jnp.exp(-ax * ax)
    return jnp.where(x < 0, -y, y)


def _gelu_exact(x):
    return 0.5 * x * (1.0 + _erf_approx(x * 0.7071067811865476))


# ---------------------------------------------------------------------------
# Kernel
# ---------------------------------------------------------------------------
def _se_kernel(x_ref, w1t_ref, w2t_ref, o_ref, *, inv_hw):
    # x_ref:   (b_tile, C, HW)  native dtype
    # w1t_ref: (C, hidden)      == W1.T   (PyTorch Linear weight is (out, in))
    # w2t_ref: (hidden, C)      == W2.T
    x = x_ref[...]

    # squeeze: global average pool over the spatial (lane) axis, f32 accumulate.
    pooled = jnp.sum(x, axis=-1, dtype=jnp.float32) * inv_hw          # (b_tile, C)

    # excitation MLP: Linear -> exact GELU -> Linear -> Sigmoid, all in f32.
    h = jnp.dot(pooled, w1t_ref[...], preferred_element_type=jnp.float32)
    h = _gelu_exact(h)
    y = jnp.dot(h, w2t_ref[...], preferred_element_type=jnp.float32)  # (b_tile, C)
    y = jax.nn.sigmoid(y).astype(x.dtype)

    # scale: broadcast channel gates over spatial positions (native dtype).
    o_ref[...] = x * y[:, :, None]


# ---------------------------------------------------------------------------
# Wrapper
# ---------------------------------------------------------------------------
def precompute_se_weights(w1, w2, dtype=jnp.float32):
    """Hoisted once per module init (not per call): transpose/cast the PyTorch
    Linear weights (out_features, in_features) into kernel operands."""
    hidden, c = w1.shape
    assert w2.shape == (c, hidden)
    return jnp.asarray(w1.T, dtype=dtype), jnp.asarray(w2.T, dtype=dtype)


def _largest_divisor_leq(n, cap):
    cap = max(1, min(n, cap))
    for d in range(cap, 0, -1):
        if n % d == 0:
            return d
    return 1


def squeeze_excitation(x_nchw, w1t, w2t, *,
                       target_block_bytes=8 * 1024 * 1024,
                       vmem_limit_bytes=48 * 1024 * 1024):
    """x_nchw: (B, C, H, W); w1t: (C, hidden); w2t: (hidden, C). Returns (B, C, H, W)."""
    B, C, H, W = x_nchw.shape
    c_in, hidden = w1t.shape
    assert c_in == C and w2t.shape == (hidden, C)
    HW = H * W

    x_flat = x_nchw.reshape(B, C, HW)

    itemsize = jnp.dtype(x_nchw.dtype).itemsize
    row_bytes = C * HW * itemsize
    w_bytes = 2 * C * hidden * jnp.dtype(w1t.dtype).itemsize

    # VMEM pipeline budget: 2 input + 2 output buffers per block, single-buffered
    # weights, and ~20% headroom for compiler scratch under vmem_limit_bytes.
    pipeline_budget = int(vmem_limit_bytes * 0.8) - w_bytes
    if 4 * row_bytes > pipeline_budget:
        # TODO(synk): add a channel/spatial-chunked two-pass fallback (pool kernel
        # + streaming scale kernel) for configs where one (1, C, HW) row x 4
        # buffers exceeds VMEM (not hit by CoAtNet SE stages).
        raise NotImplementedError("single (1, C, H*W) row too large for the VMEM pipeline")

    b_cap_target = max(1, target_block_bytes // row_bytes)
    b_cap_vmem = max(1, pipeline_budget // (4 * row_bytes))
    b_tile = _largest_divisor_leq(B, min(B, b_cap_target, b_cap_vmem))
    grid = (B // b_tile,)

    # Advisory cost estimate: stream x once in / once out, tiny MLP, two
    # transcendental passes over (hidden + C) scalars per batch row.
    flops = 2 * B * C * HW + 4 * B * C * hidden
    transcendentals = B * (2 * hidden + C)
    bytes_accessed = 2 * B * C * HW * itemsize + w_bytes

    kernel = functools.partial(_se_kernel, inv_hw=1.0 / float(HW))

    out_flat = pl.pallas_call(
        kernel,
        out_shape=jax.ShapeDtypeStruct((B, C, HW), x_nchw.dtype),
        grid_spec=pltpu.PrefetchScalarGridSpec(
            num_scalar_prefetch=0,
            grid=grid,
            in_specs=[
                pl.BlockSpec((b_tile, C, HW), lambda b: (b, 0, 0)),
                # Constant index_map -> no re-fetch; single buffer frees VMEM.
                pl.BlockSpec((C, hidden), lambda b: (0, 0),
                             pipeline_mode=pl.Buffered(1)),
                pl.BlockSpec((hidden, C), lambda b: (0, 0),
                             pipeline_mode=pl.Buffered(1)),
            ],
            out_specs=pl.BlockSpec((b_tile, C, HW), lambda b: (b, 0, 0)),
        ),
        compiler_params=pltpu.CompilerParams(
            dimension_semantics=("parallel",),
            vmem_limit_bytes=vmem_limit_bytes,
        ),
        cost_estimate=pl.CostEstimate(
            flops=flops,
            transcendentals=transcendentals,
            bytes_accessed=bytes_accessed,
        ),
    )(x_flat, w1t, w2t)

    return out_flat.reshape(B, C, H, W)


# ---------------------------------------------------------------------------
# Pure-JAX reference (mirrors the PyTorch module exactly).
# ---------------------------------------------------------------------------
def _reference(x, w1, w2):
    pooled = jnp.mean(x, axis=(2, 3))                   # (B, C)
    h = jax.nn.gelu(pooled @ w1.T, approximate=False)   # (B, hidden), exact GELU
    y = jax.nn.sigmoid(h @ w2.T)                        # (B, C)
    return x * y[:, :, None, None]


if __name__ == "__main__":
    # SqueezeAndExcitationBlock(input=32, output=32, expansion=0.25):
    # hidden = int(32 * 0.25) = 8, channels seen by forward() = 32.
    B, C, H, W = 4, 32, 16, 16
    expansion = 0.25
    hidden = int(C * expansion)

    key = jax.random.PRNGKey(0)
    kx, k1, k2 = jax.random.split(key, 3)
    x = jax.random.normal(kx, (B, C, H, W), dtype=jnp.float32)
    # Deterministic synthetic weights (PyTorch Linear layout: (out_features, in_features)).
    w1 = jax.random.normal(k1, (hidden, C), dtype=jnp.float32) * (1.0 / jnp.sqrt(C))
    w2 = jax.random.normal(k2, (C, hidden), dtype=jnp.float32) * (1.0 / jnp.sqrt(hidden))

    w1t, w2t = precompute_se_weights(w1, w2)
    ref = _reference(x, w1, w2)

    # Default path: whole batch in one block (single grid step).
    out = jax.block_until_ready(squeeze_excitation(x, w1t, w2t))
    assert out.shape == (B, C, H, W)
    assert jnp.allclose(out, ref, atol=1e-5, rtol=1e-5), "mismatch vs reference (fused block)"

    # Tiled path: force one-batch-row blocks so the multi-step grid is exercised.
    out_tiled = jax.block_until_ready(
        squeeze_excitation(x, w1t, w2t, target_block_bytes=C * H * W * 4))
    assert jnp.allclose(out_tiled, ref, atol=1e-5, rtol=1e-5), "mismatch vs reference (tiled)"

    print("KERNEL_OK")
</pallas_src>

<mosaic_0001>
module attributes {stable_mosaic.version = 11 : i64} {
  func.func @_se_kernel(%arg0: i32, %arg1: memref<4x32x256xf32, #tpu.memory_space<vmem>>, %arg2: memref<32x8xf32, #tpu.memory_space<vmem>>, %arg3: memref<8x32xf32, #tpu.memory_space<vmem>>, %arg4: memref<4x32x256xf32, #tpu.memory_space<vmem>>) attributes {dimension_semantics = [#tpu.dimension_semantics<parallel>], iteration_bounds = array<i64: 1>, scalar_prefetch = 0 : i64, scratch_operands = 0 : i64, tpu.core_type = #tpu.core_type<tc>, window_params = [{transform_indices = @transform_0, window_bounds = array<i64: 4, 32, 256>}, {pipeline_mode = #tpu.pipeline_mode<synchronous>, transform_indices = @transform_1, window_bounds = array<i64: 32, 8>}, {pipeline_mode = #tpu.pipeline_mode<synchronous>, transform_indices = @transform_2, window_bounds = array<i64: 8, 32>}, {transform_indices = @transform_3, window_bounds = array<i64: 4, 32, 256>}]} {
    %c0 = arith.constant 0 : index
    %c0_0 = arith.constant 0 : index
    %c0_1 = arith.constant 0 : index
    %0 = vector.load %arg1[%c0, %c0_0, %c0_1] : memref<4x32x256xf32, #tpu.memory_space<vmem>>, vector<4x32x256xf32>
    %cst = arith.constant dense<0.000000e+00> : vector<4x32xf32>
    %1 = vector.multi_reduction <add>, %0, %cst [2] : vector<4x32x256xf32> to vector<4x32xf32>
    %cst_2 = arith.constant 3.906250e-03 : f32
    %2 = vector.broadcast %cst_2 : f32 to vector<4x32xf32>
    %3 = arith.mulf %1, %2 : vector<4x32xf32>
    %c0_3 = arith.constant 0 : index
    %c0_4 = arith.constant 0 : index
    %4 = vector.load %arg2[%c0_3, %c0_4] : memref<32x8xf32, #tpu.memory_space<vmem>>, vector<32x8xf32>
    %cst_5 = arith.constant dense<0.000000e+00> : vector<4x8xf32>
    %5 = tpu.matmul %3, %4, %cst_5 {dimension_numbers = #tpu.dot_dimension_numbers<[1], [0], [0], [1], [0, 0, 1, 1], [], []>} : vector<4x32xf32>, vector<32x8xf32>, vector<4x8xf32> -> vector<4x8xf32>
    %cst_6 = arith.constant 5.000000e-01 : f32
    %6 = vector.broadcast %cst_6 : f32 to vector<4x8xf32>
    %7 = arith.mulf %6, %5 : vector<4x8xf32>
    %cst_7 = arith.constant 0.707106769 : f32
    %8 = vector.broadcast %cst_7 : f32 to vector<4x8xf32>
    %9 = arith.mulf %5, %8 : vector<4x8xf32>
    %10 = math.absf %9 : vector<4x8xf32>
    %cst_8 = arith.constant 0.327591091 : f32
    %11 = vector.broadcast %cst_8 : f32 to vector<4x8xf32>
    %12 = arith.mulf %11, %10 : vector<4x8xf32>
    %cst_9 = arith.constant 1.000000e+00 : f32
    %13 = vector.broadcast %cst_9 : f32 to vector<4x8xf32>
    %14 = arith.addf %13, %12 : vector<4x8xf32>
    %cst_10 = arith.constant 1.000000e+00 : f32
    %15 = vector.broadcast %cst_10 : f32 to vector<4x8xf32>
    %16 = arith.divf %15, %14 : vector<4x8xf32>
    %cst_11 = arith.constant 1.06140542 : f32
    %17 = vector.broadcast %cst_11 : f32 to vector<4x8xf32>
    %18 = arith.mulf %16, %17 : vector<4x8xf32>
    %cst_12 = arith.constant -1.45315206 : f32
    %19 = vector.broadcast %cst_12 : f32 to vector<4x8xf32>
    %20 = arith.addf %19, %18 : vector<4x8xf32>
    %21 = arith.mulf %16, %20 : vector<4x8xf32>
    %cst_13 = arith.constant 1.42141378 : f32
    %22 = vector.broadcast %cst_13 : f32 to vector<4x8xf32>
    %23 = arith.addf %22, %21 : vector<4x8xf32>
    %24 = arith.mulf %16, %23 : vector<4x8xf32>
    %cst_14 = arith.constant -0.284496725 : f32
    %25 = vector.broadcast %cst_14 : f32 to vector<4x8xf32>
    %26 = arith.addf %25, %24 : vector<4x8xf32>
    %27 = arith.mulf %16, %26 : vector<4x8xf32>
    %cst_15 = arith.constant 0.254829586 : f32
    %28 = vector.broadcast %cst_15 : f32 to vector<4x8xf32>
    %29 = arith.addf %28, %27 : vector<4x8xf32>
    %30 = arith.mulf %16, %29 : vector<4x8xf32>
    %cst_16 = arith.constant 0.000000e+00 : f32
    %31 = vector.broadcast %cst_16 : f32 to vector<4x8xf32>
    %32 = arith.subf %31, %10 : vector<4x8xf32>
    %33 = arith.mulf %32, %10 : vector<4x8xf32>
    %34 = math.exp %33 : vector<4x8xf32>
    %35 = arith.mulf %30, %34 : vector<4x8xf32>
    %cst_17 = arith.constant 1.000000e+00 : f32
    %36 = vector.broadcast %cst_17 : f32 to vector<4x8xf32>
    %37 = arith.subf %36, %35 : vector<4x8xf32>
    %cst_18 = arith.constant 0.000000e+00 : f32
    %38 = vector.broadcast %cst_18 : f32 to vector<4x8xf32>
    %39 = arith.cmpf olt, %9, %38 : vector<4x8xf32>
    %cst_19 = arith.constant 0.000000e+00 : f32
    %40 = vector.broadcast %cst_19 : f32 to vector<4x8xf32>
    %41 = arith.subf %40, %37 : vector<4x8xf32>
    %42 = arith.select %39, %41, %37 : vector<4x8xi1>, vector<4x8xf32>
    %cst_20 = arith.constant 1.000000e+00 : f32
    %43 = vector.broadcast %cst_20 : f32 to vector<4x8xf32>
    %44 = arith.addf %43, %42 : vector<4x8xf32>
    %45 = arith.mulf %7, %44 : vector<4x8xf32>
    %c0_21 = arith.constant 0 : index
    %c0_22 = arith.constant 0 : index
    %46 = vector.load %arg3[%c0_21, %c0_22] : memref<8x32xf32, #tpu.memory_space<vmem>>, vector<8x32xf32>
    %cst_23 = arith.constant dense<0.000000e+00> : vector<4x32xf32>
    %47 = tpu.matmul %45, %46, %cst_23 {dimension_numbers = #tpu.dot_dimension_numbers<[1], [0], [0], [1], [0, 0, 1, 1], [], []>} : vector<4x8xf32>, vector<8x32xf32>, vector<4x32xf32> -> vector<4x32xf32>
    %48 = arith.negf %47 : vector<4x32xf32>
    %49 = math.exp %48 : vector<4x32xf32>
    %cst_24 = arith.constant 1.000000e+00 : f32
    %50 = vector.broadcast %cst_24 : f32 to vector<4x32xf32>
    %51 = arith.addf %50, %49 : vector<4x32xf32>
    %52 = arith.divf %50, %51 : vector<4x32xf32>
    %53 = vector.shape_cast %52 : vector<4x32xf32> to vector<4x32x1xf32>
    %54 = vector.broadcast %53 : vector<4x32x1xf32> to vector<4x32x256xf32>
    %55 = arith.mulf %0, %54 : vector<4x32x256xf32>
    %c0_25 = arith.constant 0 : index
    %c0_26 = arith.constant 0 : index
    %c0_27 = arith.constant 0 : index
    %56 = vector.load %arg4[%c0_25, %c0_26, %c0_27] : memref<4x32x256xf32, #tpu.memory_space<vmem>>, vector<4x32x256xf32>
    tpu.vector_store %arg4[%c0_25, %c0_26, %c0_27], %55 {strides = array<i32>} : memref<4x32x256xf32, #tpu.memory_space<vmem>>, vector<4x32x256xf32>,
    return
  }
  func.func @transform_0(%arg0: i32) -> (i32, i32, i32) {
    %c0_i32 = arith.constant 0 : i32
    %c0_i32_0 = arith.constant 0 : i32
    %c0_i32_1 = arith.constant 0 : i32
    return %arg0, %c0_i32, %c0_i32_0 : i32, i32, i32
  }
  func.func @transform_1(%arg0: i32) -> (i32, i32) {
    %c0_i32 = arith.constant 0 : i32
    %c0_i32_0 = arith.constant 0 : i32
    %c0_i32_1 = arith.constant 0 : i32
    return %c0_i32, %c0_i32_0 : i32, i32
  }
  func.func @transform_2(%arg0: i32) -> (i32, i32) {
    %c0_i32 = arith.constant 0 : i32
    %c0_i32_0 = arith.constant 0 : i32
    %c0_i32_1 = arith.constant 0 : i32
    return %c0_i32, %c0_i32_0 : i32, i32
  }
  func.func @transform_3(%arg0: i32) -> (i32, i32, i32) {
    %c0_i32 = arith.constant 0 : i32
    %c0_i32_0 = arith.constant 0 : i32
    %c0_i32_1 = arith.constant 0 : i32
    return %arg0, %c0_i32, %c0_i32_0 : i32, i32, i32
  }
}

</mosaic_0001>

<llo_original>
// kernel: tpu_custom_call.1
$region0: #{tpu_custom_call.1}
  #allocation0 [shape = 'u32[]', space=smem, size = 0x4, offset = 0x4, fixed_abs, tag = 'smem constant byte address 0x4 - core index']
  #allocation1 [shape = 'u32[144,128]{1,0:T(1,128)}', space=vmem, size = 0x12000, scoped, tag = 'internal scratch']
  %s0 = inlined_call_operand.hbm [shape: f32[4,32,256], index: 0, kind: input, shape index: {}]
  %s1 = inlined_call_operand.vmem [shape: f32[32,8], index: 1, kind: input, shape index: {}]
  %s2 = inlined_call_operand.vmem [shape: f32[8,32], index: 2, kind: input, shape index: {}]
  %s3 = inlined_call_operand.hbm [shape: f32[4,32,256], index: 3, kind: output, shape index: {}]
  %s4 = sld [smem:[#allocation0]]
  $region26: #{tpu_custom_call.1} parent=0
    _
  %s6 = ssub.s32 1, %s4
  %s7 = scalar_select 0, %s6, %s4
  $region1: #{tpu_custom_call.1} parent=0
    #allocation2 [shape = 'u8[131072]{0}', space=vmem, size = 0x20000, scoped, tag = 'input window, operand 0, single buffered']
    #allocation3 [shape = 's32[1]{0}', space=sflag, size = 0x4, scoped, tag = 'scoped memory for tpu_custom_call.1']
    #allocation4 [shape = 's32[1]{0}', space=sflag, size = 0x4, scoped, tag = 'scoped memory for tpu_custom_call.1']
    #allocation5 [shape = 'u8[131072]{0}', space=vmem, size = 0x20000, scoped, tag = 'output window, operand 0, single buffered']
    %8 = vsyncpa [#allocation3], 0
    %9 = vsyncpa [#allocation4], 0
    // Predicated region
    $region2: #{tpu_custom_call.1} parent=1 // pred_check
      _
    $region3: #{tpu_custom_call.1} parent=1 // pred_check_branch
      %11 = sbr.rel (0) target = $region5
    $region4: #{tpu_custom_call.1} parent=1 // pred_region
      %s13 = ssub.s32 4096, 4096
      %14 = vsyncadd [#allocation3], %s13
      %s15 = sshll.u32 [#allocation2], 4
      %s16 = int_to_ptr.vmem [resolvable:$true] %s15
      %21 = dma.hbm_to_vmem [thread:$0]  %s0, 4096, %s16, [#allocation3], 256, 256, 16
    $region5: #{tpu_custom_call.1} parent=1 // pred_fallthru
      _
    // Predicated region
    $region6: #{tpu_custom_call.1} parent=1 // pred_check
      _
    $region7: #{tpu_custom_call.1} parent=1 // pred_check_branch
      %23 = sbr.rel (0) target = $region9
    $region8: #{tpu_custom_call.1} parent=1 // pred_region
      _
    $region9: #{tpu_custom_call.1} parent=1 // pred_fallthru
      _
    // Predicated region
    $region10: #{tpu_custom_call.1} parent=1 // pred_check
      _
    $region11: #{tpu_custom_call.1} parent=1 // pred_check_branch
      %25 = sbr.rel (0) target = $region13
    $region12: #{tpu_custom_call.1} parent=1 // pred_region
      _
    $region13: #{tpu_custom_call.1} parent=1 // pred_fallthru
      _
    // Predicated region
    $region14: #{tpu_custom_call.1} parent=1 // pred_check
      _
    $region15: #{tpu_custom_call.1} parent=1 // pred_check_branch
      %27 = sbr.rel (0) target = $region17
    $region16: #{tpu_custom_call.1} parent=1 // pred_region
      %28 = dma.done [#allocation3], 4096
    $region17: #{tpu_custom_call.1} parent=1 // pred_fallthru
      _
    %v29 = vld [vmem:[#allocation2] sm:$0xff]
    %v30 = vld [vmem:[#allocation2 + $0x8] sm:$0xff]
    %v31 = vld [vmem:[#allocation2 + $0x10] sm:$0xff]
    %v32 = vld [vmem:[#allocation2 + $0x18] sm:$0xff]
    %v33 = vld [vmem:[#allocation2 + $0x20] sm:$0xff]
    %v34 = vld [vmem:[#allocation2 + $0x28] sm:$0xff]
    %v35 = vld [vmem:[#allocation2 + $0x30] sm:$0xff]
    %v36 = vld [vmem:[#allocation2 + $0x38] sm:$0xff]
    %v37 = vld [vmem:[#allocation2 + $0x40] sm:$0xff]
    %v38 = vld [vmem:[#allocation2 + $0x48] sm:$0xff]
    %v39 = vld [vmem:[#allocation2 + $0x50] sm:$0xff]
    %v40 = vld [vmem:[#allocation2 + $0x58] sm:$0xff]
    %v41 = vld [vmem:[#allocation2 + $0x60] sm:$0xff]
    %v42 = vld [vmem:[#allocation2 + $0x68] sm:$0xff]
    %v43 = vld [vmem:[#allocation2 + $0x70] sm:$0xff]
    %v44 = vld [vmem:[#allocation2 + $0x78] sm:$0xff]
    %v45 = vld [vmem:[#allocation2 + $0x80] sm:$0xff]
    %v46 = vld [vmem:[#allocation2 + $0x88] sm:$0xff]
    %v47 = vld [vmem:[#allocation2 + $0x90] sm:$0xff]
    %v48 = vld [vmem:[#allocation2 + $0x98] sm:$0xff]
    %v49 = vld [vmem:[#allocation2 + $0xa0] sm:$0xff]
    %v50 = vld [vmem:[#allocation2 + $0xa8] sm:$0xff]
    %v51 = vld [vmem:[#allocation2 + $0xb0] sm:$0xff]
    %v52 = vld [vmem:[#allocation2 + $0xb8] sm:$0xff]
    %v53 = vld [vmem:[#allocation2 + $0xc0] sm:$0xff]
    %v54 = vld [vmem:[#allocation2 + $0xc8] sm:$0xff]
    %v55 = vld [vmem:[#allocation2 + $0xd0] sm:$0xff]
    %v56 = vld [vmem:[#allocation2 + $0xd8] sm:$0xff]
    %v57 = vld [vmem:[#allocation2 + $0xe0] sm:$0xff]
    %v58 = vld [vmem:[#allocation2 + $0xe8] sm:$0xff]
    %v59 = vld [vmem:[#allocation2 + $0xf0] sm:$0xff]
    %v60 = vld [vmem:[#allocation2 + $0xf8] sm:$0xff]
    %v61 = vadd.f32 %v29, %v30
    %62 = vadd.xlane.f32.xlu0 %v61
    %v63 = vpop.xlane.xlu0 %62
    %v64 = vadd.f32 %v31, %v32
    %65 = vadd.xlane.f32.xlu0 %v64
    %v66 = vpop.xlane.xlu0 %65
    %v67 = vadd.f32 %v33, %v34
    %68 = vadd.xlane.f32.xlu0 %v67
    %v69 = vpop.xlane.xlu0 %68
    %v70 = vadd.f32 %v35, %v36
    %71 = vadd.xlane.f32.xlu0 %v70
    %v72 = vpop.xlane.xlu0 %71
    %v73 = vadd.f32 %v37, %v38
    %74 = vadd.xlane.f32.xlu0 %v73
    %v75 = vpop.xlane.xlu0 %74
    %v76 = vadd.f32 %v39, %v40
    %77 = vadd.xlane.f32.xlu0 %v76
    %v78 = vpop.xlane.xlu0 %77
    %v79 = vadd.f32 %v41, %v42
    %80 = vadd.xlane.f32.xlu0 %v79
    %v81 = vpop.xlane.xlu0 %80
    %v82 = vadd.f32 %v43, %v44
    %83 = vadd.xlane.f32.xlu0 %v82
    %v84 = vpop.xlane.xlu0 %83
    %v85 = vadd.f32 %v45, %v46
    %86 = vadd.xlane.f32.xlu0 %v85
    %v87 = vpop.xlane.xlu0 %86
    %v88 = vadd.f32 %v47, %v48
    %89 = vadd.xlane.f32.xlu0 %v88
    %v90 = vpop.xlane.xlu0 %89
    %v91 = vadd.f32 %v49, %v50
    %92 = vadd.xlane.f32.xlu0 %v91
    %v93 = vpop.xlane.xlu0 %92
    %v94 = vadd.f32 %v51, %v52
    %95 = vadd.xlane.f32.xlu0 %v94
    %v96 = vpop.xlane.xlu0 %95
    %v97 = vadd.f32 %v53, %v54
    %98 = vadd.xlane.f32.xlu0 %v97
    %v99 = vpop.xlane.xlu0 %98
    %v100 = vadd.f32 %v55, %v56
    %101 = vadd.xlane.f32.xlu0 %v100
    %v102 = vpop.xlane.xlu0 %101
    %v103 = vadd.f32 %v57, %v58
    %104 = vadd.xlane.f32.xlu0 %v103
    %v105 = vpop.xlane.xlu0 %104
    %v106 = vadd.f32 %v59, %v60
    %107 = vadd.xlane.f32.xlu0 %v106
    %v108 = vpop.xlane.xlu0 %107
    %v109 = vmul.f32 %v63, 0.00390625
    %v110 = vmul.f32 %v66, 0.00390625
    %v111 = vmul.f32 %v69, 0.00390625
    %v112 = vmul.f32 %v72, 0.00390625
    %v113 = vmul.f32 %v75, 0.00390625
    %v114 = vmul.f32 %v78, 0.00390625
    %v115 = vmul.f32 %v81, 0.00390625
    %v116 = vmul.f32 %v84, 0.00390625
    %v117 = vmul.f32 %v87, 0.00390625
    %v118 = vmul.f32 %v90, 0.00390625
    %v119 = vmul.f32 %v93, 0.00390625
    %v120 = vmul.f32 %v96, 0.00390625
    %v121 = vmul.f32 %v99, 0.00390625
    %v122 = vmul.f32 %v102, 0.00390625
    %v123 = vmul.f32 %v105, 0.00390625
    %v124 = vmul.f32 %v108, 0.00390625
    %v125 = vld [vmem:[%s1] sm:$0xff]
    %v126 = vld [vmem:[%s1 + $0x8] sm:$0xff]
    %v127 = vld [vmem:[%s1 + $0x10] sm:$0xff]
    %v128 = vld [vmem:[%s1 + $0x18] sm:$0xff]
    %v145 = vlaneseq
    %v146 = vand.u32 %v145, 127
    %v147 = vlaneseq
    %v148 = vshrl.u32 %v147, 7
    %v149 = vsub.s32 %v146, %v148
    %v150 = vrot.slane %v109, %v149
    %v151 = vadd.s32 %v146, 4294967288
    %v152 = vlaneseq
    %v153 = vshrl.u32 %v152, 7
    %v154 = vsub.s32 %v151, %v153
    %v155 = vrot.slane %v110, %v154
    %vm156 = vcmask 130112
    %v157 = vsel %vm156, %v155, %v150
    %v158 = vadd.s32 %v146, 4294967280
    %v159 = vlaneseq
    %v160 = vshrl.u32 %v159, 7
    %v161 = vsub.s32 %v158, %v160
    %v162 = vrot.slane %v111, %v161
    %vm163 = vcmask 195712
    %v164 = vsel %vm163, %v162, %v157
    %v165 = vadd.s32 %v146, 4294967272
    %v166 = vlaneseq
    %v167 = vshrl.u32 %v166, 7
    %v168 = vsub.s32 %v165, %v167
    %v169 = vrot.slane %v112, %v168
    %vm170 = vcmask 261312
    %v171 = vsel %vm170, %v169, %v164
    %v172 = vlaneseq
    %v173 = vshrl.u32 %v172, 7
    %v174 = vsub.s32 %v146, %v173
    %v175 = vrot.slane %v113, %v174
    %v176 = vlaneseq
    %v177 = vshrl.u32 %v176, 7
    %v178 = vsub.s32 %v151, %v177
    %v179 = vrot.slane %v114, %v178
    %v180 = vsel %vm156, %v179, %v175
    %v181 = vlaneseq
    %v182 = vshrl.u32 %v181, 7
    %v183 = vsub.s32 %v158, %v182
    %v184 = vrot.slane %v115, %v183
    %v185 = vsel %vm163, %v184, %v180
    %v186 = vlaneseq
    %v187 = vshrl.u32 %v186, 7
    %v188 = vsub.s32 %v165, %v187
    %v189 = vrot.slane %v116, %v188
    %v190 = vsel %vm170, %v189, %v185
    %v191 = vlaneseq
    %v192 = vshrl.u32 %v191, 7
    %v193 = vsub.s32 %v146, %v192
    %v194 = vrot.slane %v117, %v193
    %v195 = vlaneseq
    %v196 = vshrl.u32 %v195, 7
    %v197 = vsub.s32 %v151, %v196
    %v198 = vrot.slane %v118, %v197
    %v199 = vsel %vm156, %v198, %v194
    %v200 = vlaneseq
    %v201 = vshrl.u32 %v200, 7
    %v202 = vsub.s32 %v158, %v201
    %v203 = vrot.slane %v119, %v202
    %v204 = vsel %vm163, %v203, %v199
    %v205 = vlaneseq
    %v206 = vshrl.u32 %v205, 7
    %v207 = vsub.s32 %v165, %v206
    %v208 = vrot.slane %v120, %v207
    %v209 = vsel %vm170, %v208, %v204
    %v210 = vlaneseq
    %v211 = vshrl.u32 %v210, 7
    %v212 = vsub.s32 %v146, %v211
    %v213 = vrot.slane %v121, %v212
    %v214 = vlaneseq
    %v215 = vshrl.u32 %v214, 7
    %v216 = vsub.s32 %v151, %v215
    %v217 = vrot.slane %v122, %v216
    %v218 = vsel %vm156, %v217, %v213
    %v219 = vlaneseq
    %v220 = vshrl.u32 %v219, 7
    %v221 = vsub.s32 %v158, %v220
    %v222 = vrot.slane %v123, %v221
    %v223 = vsel %vm163, %v222, %v218
    %v224 = vlaneseq
    %v225 = vshrl.u32 %v224, 7
    %v226 = vsub.s32 %v165, %v225
    %v227 = vrot.slane %v124, %v226
    %v228 = vsel %vm170, %v227, %v223
    %vm229 = vcmask 1041409
    %v230 = vsel %vm229, %v190, %v171
    %vm231 = vcmask 1042434
    %v232 = vsel %vm231, %v209, %v230
    %vm233 = vcmask 1043459
    %v234 = vsel %vm233, %v228, %v232
    %vm235 = vcmask 261120
    %v236 = vsel %vm235, %v234, 0
    %238 = vmatprep.subr.mxu0 0.0
    %239 = vmatpush1.msra.mxu0 %v125
    %240 = vmatprep.subr.mxu0 0.0
    %241 = vmatpush1.msra.mxu0 %v126
    %242 = vmatprep.subr.mxu0 0.0
    %243 = vmatpush1.msra.mxu0 %v127
    %244 = vmatprep.subr.mxu0 0.0
    %245 = vmatpush1.msra.mxu0 %v128
    %246 = vmatprep.subr.mxu0 0.0
    %247 = vmatpush1.msra.mxu0 0.0
    %248 = vmatprep.subr.mxu0 0.0
    %249 = vmatpush1.msra.mxu0 0.0
    %250 = vmatprep.subr.mxu0 0.0
    %251 = vmatpush1.msra.mxu0 0.0
    %252 = vmatprep.subr.mxu0 0.0
    %253 = vmatpush1.msra.mxu0 0.0
    %254 = vmatprep.subr.mxu0 0.0
    %255 = vmatpush1.msra.mxu0 0.0
    %256 = vmatprep.subr.mxu0 0.0
    %257 = vmatpush1.msra.mxu0 0.0
    %258 = vmatprep.subr.mxu0 0.0
    %259 = vmatpush1.msra.mxu0 0.0
    %260 = vmatprep.subr.mxu0 0.0
    %261 = vmatpush1.msra.mxu0 0.0
    %262 = vmatprep.subr.mxu0 0.0
    %263 = vmatpush1.msra.mxu0 0.0
    %264 = vmatprep.subr.mxu0 0.0
    %265 = vmatpush1.msra.mxu0 0.0
    %266 = vmatprep.subr.mxu0 0.0
    %267 = vmatpush1.msra.mxu0 0.0
    %268 = vmatprep.subr.mxu0 0.0
    %269 = vmatpush1.msra.mxu0 0.0
    %270 = vmatprep.subr.mxu0 0.0
    %271 = vmatpush1.msra.mxu0 0.0
    %272 = vmatprep.subr.mxu0 0.0
    %273 = vmatpush1.msra.mxu0 0.0
    %274 = vmatprep.subr.mxu0 0.0
    %275 = vmatpush1.msra.mxu0 0.0
    %276 = vmatprep.subr.mxu0 0.0
    %277 = vmatpush1.msra.mxu0 0.0
    %278 = vmatprep.subr.mxu0 0.0
    %279 = vmatpush1.msra.mxu0 0.0
    %280 = vmatprep.subr.mxu0 0.0
    %281 = vmatpush1.msra.mxu0 0.0
    %282 = vmatprep.subr.mxu0 0.0
    %283 = vmatpush1.msra.mxu0 0.0
    %284 = vmatprep.subr.mxu0 0.0
    %285 = vmatpush1.msra.mxu0 0.0
    %286 = vmatprep.subr.mxu0 0.0
    %287 = vmatpush1.msra.mxu0 0.0
    %288 = vmatprep.subr.mxu0 0.0
    %289 = vmatpush1.msra.mxu0 0.0
    %290 = vmatprep.subr.mxu0 0.0
    %291 = vmatpush1.msra.mxu0 0.0
    %292 = vmatprep.subr.mxu0 0.0
    %293 = vmatpush1.msra.mxu0 0.0
    %294 = vmatprep.subr.mxu0 0.0
    %295 = vmatpush1.msra.mxu0 0.0
    %296 = vmatprep.subr.mxu0 0.0
    %297 = vmatpush1.msra.mxu0 0.0
    %298 = vmatprep.subr.mxu0 0.0
    %299 = vmatpush1.msra.mxu0 0.0
    %300 = vmatprep.subr.mxu0 0.0
    %301 = vmatpush1.msra.mxu0 0.0
    %302 = vmatprep.mubr.f32.mxu0 0.0
    %303 = vmatmul.mubr.f32.gmra.mrb[0].mxu0 %v236
    %v304 = vpop.f32.mrb[0].mxu0
    %v305 = vadd.f32 0.0, %v304
    %v306 = vpop.f32.mrb[0].mxu0
    %307 = vdwg.mxu0
    %v308 = vmul.f32 %v305, 0.5
    %v309 = vmul.f32 %v305, 0.70710677
    %v310 = vand.u32 2147483647, %v309
    %v311 = vmul.f32 %v310, 0.3275911
    %v312 = vadd.f32 %v311, 1.0
    %v313 = vrcp.pop %v312
    %v314 = vmul.f32 1.0, %v313
    %v315 = vmul.f32 %v314, 1.0614054
    %v316 = vadd.f32 %v315, -1.4531521
    %v317 = vmul.f32 %v314, %v316
    %v318 = vadd.f32 %v317, 1.4214138
    %v319 = vmul.f32 %v314, %v318
    %v320 = vadd.f32 %v319, -0.28449672
    %v321 = vmul.f32 %v314, %v320
    %v322 = vadd.f32 %v321, 0.2548296
    %v323 = vmul.f32 %v314, %v322
    %v324 = vsub.f32 0.0, %v310
    %v325 = vmul.f32 %v324, %v310
    %v326 = vmul.f32 %v325, 1.442695
    %v327 = vpow.pop %v326
    %v328 = vmul.f32 %v323, %v327
    %v329 = vsub.f32 1.0, %v328
    %vm330 = vcmp.lt.f32.partialorder %v309, 0.0
    %v331 = vsub.f32 0.0, %v329
    %v332 = vsel %vm330, %v331, %v329
    %v333 = vadd.f32 %v332, 1.0
    %v334 = vmul.f32 %v308, %v333
    %v335 = vld [vmem:[%s2] sm:$0xff]
    %vm336 = vcmask 64512
    %v338 = vsel %vm336, %v334, 0
    %340 = vmatprep.subr.mxu0 0.0
    %341 = vmatpush1.msra.mxu0 %v335
    %342 = vmatprep.subr.mxu0 0.0
    %343 = vmatpush1.msra.mxu0 0.0
    %344 = vmatprep.subr.mxu0 0.0
    %345 = vmatpush1.msra.mxu0 0.0
    %346 = vmatprep.subr.mxu0 0.0
    %347 = vmatpush1.msra.mxu0 0.0
    %348 = vmatprep.subr.mxu0 0.0
    %349 = vmatpush1.msra.mxu0 0.0
    %350 = vmatprep.subr.mxu0 0.0
    %351 = vmatpush1.msra.mxu0 0.0
    %352 = vmatprep.subr.mxu0 0.0
    %353 = vmatpush1.msra.mxu0 0.0
    %354 = vmatprep.subr.mxu0 0.0
    %355 = vmatpush1.msra.mxu0 0.0
    %356 = vmatprep.subr.mxu0 0.0
    %357 = vmatpush1.msra.mxu0 0.0
    %358 = vmatprep.subr.mxu0 0.0
    %359 = vmatpush1.msra.mxu0 0.0
    %360 = vmatprep.subr.mxu0 0.0
    %361 = vmatpush1.msra.mxu0 0.0
    %362 = vmatprep.subr.mxu0 0.0
    %363 = vmatpush1.msra.mxu0 0.0
    %364 = vmatprep.subr.mxu0 0.0
    %365 = vmatpush1.msra.mxu0 0.0
    %366 = vmatprep.subr.mxu0 0.0
    %367 = vmatpush1.msra.mxu0 0.0
    %368 = vmatprep.subr.mxu0 0.0
    %369 = vmatpush1.msra.mxu0 0.0
    %370 = vmatprep.subr.mxu0 0.0
    %371 = vmatpush1.msra.mxu0 0.0
    %372 = vmatprep.subr.mxu0 0.0
    %373 = vmatpush1.msra.mxu0 0.0
    %374 = vmatprep.subr.mxu0 0.0
    %375 = vmatpush1.msra.mxu0 0.0
    %376 = vmatprep.subr.mxu0 0.0
    %377 = vmatpush1.msra.mxu0 0.0
    %378 = vmatprep.subr.mxu0 0.0
    %379 = vmatpush1.msra.mxu0 0.0
    %380 = vmatprep.subr.mxu0 0.0
    %381 = vmatpush1.msra.mxu0 0.0
    %382 = vmatprep.subr.mxu0 0.0
    %383 = vmatpush1.msra.mxu0 0.0
    %384 = vmatprep.subr.mxu0 0.0
    %385 = vmatpush1.msra.mxu0 0.0
    %386 = vmatprep.subr.mxu0 0.0
    %387 = vmatpush1.msra.mxu0 0.0
    %388 = vmatprep.subr.mxu0 0.0
    %389 = vmatpush1.msra.mxu0 0.0
    %390 = vmatprep.subr.mxu0 0.0
    %391 = vmatpush1.msra.mxu0 0.0
    %392 = vmatprep.subr.mxu0 0.0
    %393 = vmatpush1.msra.mxu0 0.0
    %394 = vmatprep.subr.mxu0 0.0
    %395 = vmatpush1.msra.mxu0 0.0
    %396 = vmatprep.subr.mxu0 0.0
    %397 = vmatpush1.msra.mxu0 0.0
    %398 = vmatprep.subr.mxu0 0.0
    %399 = vmatpush1.msra.mxu0 0.0
    %400 = vmatprep.subr.mxu0 0.0
    %401 = vmatpush1.msra.mxu0 0.0
    %402 = vmatprep.subr.mxu0 0.0
    %403 = vmatpush1.msra.mxu0 0.0
    %404 = vmatprep.mubr.f32.mxu0 0.0
    %405 = vmatmul.mubr.f32.gmra.mrb[0].mxu0 %v338
    %v406 = vpop.f32.mrb[0].mxu0
    %v407 = vadd.f32 0.0, %v406
    %v408 = vpop.f32.mrb[0].mxu0
    %409 = vdwg.mxu0
    %v410 = vxor.u32 %v407, 2147483648
    %v411 = vmul.f32 %v410, 1.442695
    %v412 = vpow.pop %v411
    %v413 = vadd.f32 %v412, 1.0
    %v414 = vrcp.pop %v413
    %v415 = vmul.f32 1.0, %v414
    %v416 = vlaneseq
    %v417 = vshrl.u32 %v416, 7
    %v418 = vsub.s32 0, %v417
    %v419 = vrot.slane %v415, %v418
    %421 = vbcast.lane.b32.xlu0 %v419, 256
    %v422 = vpop.permute.xlu0 %421
    %s424 = sor.u32 256, 8
    %425 = vbcast.lane.b32.xlu0 %v419, %s424
    %v426 = vpop.permute.xlu0 %425
    %s428 = sor.u32 256, 16
    %429 = vbcast.lane.b32.xlu0 %v419, %s428
    %v430 = vpop.permute.xlu0 %429
    %s432 = sor.u32 256, 24
    %433 = vbcast.lane.b32.xlu0 %v419, %s432
    %v434 = vpop.permute.xlu0 %433
    %v435 = vlaneseq
    %v436 = vshrl.u32 %v435, 7
    %v437 = vsub.s32 1, %v436
    %v438 = vrot.slane %v415, %v437
    %440 = vbcast.lane.b32.xlu0 %v438, 256
    %v441 = vpop.permute.xlu0 %440
    %s443 = sor.u32 256, 8
    %444 = vbcast.lane.b32.xlu0 %v438, %s443
    %v445 = vpop.permute.xlu0 %444
    %s447 = sor.u32 256, 16
    %448 = vbcast.lane.b32.xlu0 %v438, %s447
    %v449 = vpop.permute.xlu0 %448
    %s451 = sor.u32 256, 24
    %452 = vbcast.lane.b32.xlu0 %v438, %s451
    %v453 = vpop.permute.xlu0 %452
    %v454 = vlaneseq
    %v455 = vshrl.u32 %v454, 7
    %v456 = vsub.s32 2, %v455
    %v457 = vrot.slane %v415, %v456
    %459 = vbcast.lane.b32.xlu0 %v457, 256
    %v460 = vpop.permute.xlu0 %459
    %s462 = sor.u32 256, 8
    %463 = vbcast.lane.b32.xlu0 %v457, %s462
    %v464 = vpop.permute.xlu0 %463
    %s466 = sor.u32 256, 16
    %467 = vbcast.lane.b32.xlu0 %v457, %s466
    %v468 = vpop.permute.xlu0 %467
    %s470 = sor.u32 256, 24
    %471 = vbcast.lane.b32.xlu0 %v457, %s470
    %v472 = vpop.permute.xlu0 %471
    %v473 = vlaneseq
    %v474 = vshrl.u32 %v473, 7
    %v475 = vsub.s32 3, %v474
    %v476 = vrot.slane %v415, %v475
    %478 = vbcast.lane.b32.xlu0 %v476, 256
    %v479 = vpop.permute.xlu0 %478
    %s481 = sor.u32 256, 8
    %482 = vbcast.lane.b32.xlu0 %v476, %s481
    %v483 = vpop.permute.xlu0 %482
    %s485 = sor.u32 256, 16
    %486 = vbcast.lane.b32.xlu0 %v476, %s485
    %v487 = vpop.permute.xlu0 %486
    %s489 = sor.u32 256, 24
    %490 = vbcast.lane.b32.xlu0 %v476, %s489
    %v491 = vpop.permute.xlu0 %490
    %v492 = vmul.f32 %v29, %v422
    %v493 = vmul.f32 %v30, %v422
    %v494 = vmul.f32 %v31, %v426
    %v495 = vmul.f32 %v32, %v426
    %v496 = vmul.f32 %v33, %v430
    %v497 = vmul.f32 %v34, %v430
    %v498 = vmul.f32 %v35, %v434
    %v499 = vmul.f32 %v36, %v434
    %v500 = vmul.f32 %v37, %v441
    %v501 = vmul.f32 %v38, %v441
    %v502 = vmul.f32 %v39, %v445
    %v503 = vmul.f32 %v40, %v445
    %v504 = vmul.f32 %v41, %v449
    %v505 = vmul.f32 %v42, %v449
    %v506 = vmul.f32 %v43, %v453
    %v507 = vmul.f32 %v44, %v453
    %v508 = vmul.f32 %v45, %v460
    %v509 = vmul.f32 %v46, %v460
    %v510 = vmul.f32 %v47, %v464
    %v511 = vmul.f32 %v48, %v464
    %v512 = vmul.f32 %v49, %v468
    %v513 = vmul.f32 %v50, %v468
    %v514 = vmul.f32 %v51, %v472
    %v515 = vmul.f32 %v52, %v472
    %v516 = vmul.f32 %v53, %v479
    %v517 = vmul.f32 %v54, %v479
    %v518 = vmul.f32 %v55, %v483
    %v519 = vmul.f32 %v56, %v483
    %v520 = vmul.f32 %v57, %v487
    %v521 = vmul.f32 %v58, %v487
    %v522 = vmul.f32 %v59, %v491
    %v523 = vmul.f32 %v60, %v491
    %524 = vst [vmem:[#allocation5] sm:$0xff] %v492
    %525 = vst [vmem:[#allocation5 + $0x8] sm:$0xff] %v493
    %526 = vst [vmem:[#allocation5 + $0x10] sm:$0xff] %v494
    %527 = vst [vmem:[#allocation5 + $0x18] sm:$0xff] %v495
    %528 = vst [vmem:[#allocation5 + $0x20] sm:$0xff] %v496
    %529 = vst [vmem:[#allocation5 + $0x28] sm:$0xff] %v497
    %530 = vst [vmem:[#allocation5 + $0x30] sm:$0xff] %v498
    %531 = vst [vmem:[#allocation5 + $0x38] sm:$0xff] %v499
    %532 = vst [vmem:[#allocation5 + $0x40] sm:$0xff] %v500
    %533 = vst [vmem:[#allocation5 + $0x48] sm:$0xff] %v501
    %534 = vst [vmem:[#allocation5 + $0x50] sm:$0xff] %v502
    %535 = vst [vmem:[#allocation5 + $0x58] sm:$0xff] %v503
    %536 = vst [vmem:[#allocation5 + $0x60] sm:$0xff] %v504
    %537 = vst [vmem:[#allocation5 + $0x68] sm:$0xff] %v505
    %538 = vst [vmem:[#allocation5 + $0x70] sm:$0xff] %v506
    %539 = vst [vmem:[#allocation5 + $0x78] sm:$0xff] %v507
    %540 = vst [vmem:[#allocation5 + $0x80] sm:$0xff] %v508
    %541 = vst [vmem:[#allocation5 + $0x88] sm:$0xff] %v509
    %542 = vst [vmem:[#allocation5 + $0x90] sm:$0xff] %v510
    %543 = vst [vmem:[#allocation5 + $0x98] sm:$0xff] %v511
    %544 = vst [vmem:[#allocation5 + $0xa0] sm:$0xff] %v512
    %545 = vst [vmem:[#allocation5 + $0xa8] sm:$0xff] %v513
    %546 = vst [vmem:[#allocation5 + $0xb0] sm:$0xff] %v514
    %547 = vst [vmem:[#allocation5 + $0xb8] sm:$0xff] %v515
    %548 = vst [vmem:[#allocation5 + $0xc0] sm:$0xff] %v516
    %549 = vst [vmem:[#allocation5 + $0xc8] sm:$0xff] %v517
    %550 = vst [vmem:[#allocation5 + $0xd0] sm:$0xff] %v518
    %551 = vst [vmem:[#allocation5 + $0xd8] sm:$0xff] %v519
    %552 = vst [vmem:[#allocation5 + $0xe0] sm:$0xff] %v520
    %553 = vst [vmem:[#allocation5 + $0xe8] sm:$0xff] %v521
    %554 = vst [vmem:[#allocation5 + $0xf0] sm:$0xff] %v522
    %555 = vst [vmem:[#allocation5 + $0xf8] sm:$0xff] %v523
    // Predicated region
    $region18: #{tpu_custom_call.1} parent=1 // pred_check
      _
    $region19: #{tpu_custom_call.1} parent=1 // pred_check_branch
      %557 = sbr.rel (0) target = $region21
    $region20: #{tpu_custom_call.1} parent=1 // pred_region
      %s559 = ssub.s32 4096, 4096
      %560 = vsyncadd [#allocation4], %s559
      %s561 = sshll.u32 [#allocation5], 4
      %s562 = int_to_ptr.vmem [resolvable:$true] %s561
      %567 = dma.vmem_to_hbm [thread:$0]  %s562, 4096, %s3, [#allocation4], 256, 256, 16
    $region21: #{tpu_custom_call.1} parent=1 // pred_fallthru
      _
    // Predicated region
    $region22: #{tpu_custom_call.1} parent=1 // pred_check
      _
    $region23: #{tpu_custom_call.1} parent=1 // pred_check_branch
      %569 = sbr.rel (0) target = $region25
    $region24: #{tpu_custom_call.1} parent=1 // pred_region
      %570 = dma.done [#allocation4], 4096
    $region25: #{tpu_custom_call.1} parent=1 // pred_fallthru
      _
    %571 = vsyncpa [#allocation3], 1
    %572 = vsyncpa [#allocation4], 1

</llo_original>
